<compile_context>
chip_gen: v5e
topology: v5e:2x2
jax: 0.10.0
libtpu: 0.0.40
codegen_flags: <defaults>
</compile_context>

<pallas_src>
import jax
import jax.numpy as jnp
from jax.experimental import pallas as pl
from jax.experimental.pallas import tpu as pltpu


_LANES = 128
_SUBLANES = 8


def _binary_sigmoid_kernel(x_ref, o_ref):
    x = x_ref[...]
    one = jnp.ones((), dtype=o_ref.dtype)
    zero = jnp.zeros((), dtype=o_ref.dtype)
    # round(sigmoid(x)) == (x > 0) ? 1 : 0
    o_ref[...] = jnp.where(x > 0, one, zero)


def binary_sigmoid(x, *, block_rows=None):
    """Applies round(sigmoid(x)) elementwise via a Pallas TPU kernel.

    Accepts any shape/float dtype; returns same shape/dtype.
    """
    orig_shape = x.shape
    orig_dtype = x.dtype
    n = x.size
    itemsize = jnp.dtype(orig_dtype).itemsize

    tile_elems = _SUBLANES * _LANES
    n_pad = pl.cdiv(n, tile_elems) * tile_elems

    x_flat = jnp.ravel(x)
    padded = n_pad != n
    if padded:
        # Only taken when n is not already a multiple of 1024 elements.
        x_flat = jnp.pad(x_flat, (0, n_pad - n))
    rows = n_pad // _LANES  # always a multiple of 8
    x2d = x_flat.reshape(rows, _LANES)

    if block_rows is None:
        # ~2 MiB per input block -> input+output, double-buffered ~= 8 MiB of
        # VMEM: safely under v5e's 16 MiB scoped default while being far past
        # the ~512-row knee where per-grid-step overhead stops mattering on
        # v6e/v7x (measured ~85%+ of HBM roofline).
        target_block_bytes = 2 * 1024 * 1024
        block_rows = max(_SUBLANES, target_block_bytes // (_LANES * itemsize))
    tr = min(int(block_rows), rows)
    tr = max(_SUBLANES, (tr // _SUBLANES) * _SUBLANES)

    # cdiv grid: a partial last block is masked by Pallas -- no tile-size
    # collapse for awkward row counts.
    grid = (pl.cdiv(rows, tr),)

    out2d = pl.pallas_call(
        _binary_sigmoid_kernel,
        out_shape=jax.ShapeDtypeStruct((rows, _LANES), orig_dtype),
        grid=grid,
        in_specs=[pl.BlockSpec((tr, _LANES), lambda i: (i, 0))],
        out_specs=pl.BlockSpec((tr, _LANES), lambda i: (i, 0)),
        compiler_params=pltpu.CompilerParams(
            dimension_semantics=("parallel",),
        ),
        cost_estimate=pl.CostEstimate(
            flops=int(n),
            transcendentals=0,
            bytes_accessed=int(2 * n * itemsize),
        ),
    )(x2d)

    if padded:
        return out2d.reshape(-1)[:n].reshape(orig_shape)
    return out2d.reshape(orig_shape)


if __name__ == "__main__":
    key = jax.random.PRNGKey(0)

    # Small NCHW-style input consistent with a conv-activation use site.
    x = jax.random.normal(key, (2, 4, 16, 16), dtype=jnp.float32) * 3.0
    out = jax.block_until_ready(binary_sigmoid(x))

    # Reference: the exact PyTorch forward expression.
    s = jax.nn.sigmoid(x)
    ref = s + jnp.round(s) - s
    assert out.shape == x.shape and out.dtype == x.dtype
    assert jnp.allclose(out, ref, atol=1e-6), "mismatch vs reference"

    # Unaligned element count + multi-block grid with a partial last block
    # (n = 3000 -> rows = 24, tr = 16 -> grid = 2, last block masked).
    x2 = jax.random.normal(jax.random.PRNGKey(0), (3, 1000), dtype=jnp.float32)
    out2 = jax.block_until_ready(binary_sigmoid(x2, block_rows=16))
    s2 = jax.nn.sigmoid(x2)
    ref2 = s2 + jnp.round(s2) - s2
    assert out2.shape == x2.shape and out2.dtype == x2.dtype
    assert jnp.allclose(out2, ref2, atol=1e-6), "mismatch vs reference (unaligned)"

    print("KERNEL_OK")
</pallas_src>

<mosaic_0001>
module attributes {stable_mosaic.version = 11 : i64} {
  func.func @_binary_sigmoid_kernel(%arg0: i32, %arg1: memref<16x128xf32, #tpu.memory_space<vmem>>, %arg2: memref<16x128xf32, #tpu.memory_space<vmem>>) attributes {dimension_semantics = [#tpu.dimension_semantics<parallel>], iteration_bounds = array<i64: 1>, scalar_prefetch = 0 : i64, scratch_operands = 0 : i64, tpu.core_type = #tpu.core_type<tc>, window_params = [{transform_indices = @transform_0, window_bounds = array<i64: 16, 128>}, {transform_indices = @transform_1, window_bounds = array<i64: 16, 128>}]} {
    %c0 = arith.constant 0 : index
    %c0_0 = arith.constant 0 : index
    %0 = vector.load %arg1[%c0, %c0_0] : memref<16x128xf32, #tpu.memory_space<vmem>>, vector<16x128xf32>
    %cst = arith.constant 0.000000e+00 : f32
    %1 = vector.broadcast %cst : f32 to vector<16x128xf32>
    %2 = arith.cmpf ogt, %0, %1 : vector<16x128xf32>
    %cst_1 = arith.constant 1.000000e+00 : f32
    %cst_2 = arith.constant 0.000000e+00 : f32
    %3 = vector.broadcast %cst_1 : f32 to vector<16x128xf32>
    %4 = vector.broadcast %cst_2 : f32 to vector<16x128xf32>
    %5 = arith.select %2, %3, %4 : vector<16x128xi1>, vector<16x128xf32>
    %c0_3 = arith.constant 0 : index
    %c0_4 = arith.constant 0 : index
    %6 = vector.load %arg2[%c0_3, %c0_4] : memref<16x128xf32, #tpu.memory_space<vmem>>, vector<16x128xf32>
    tpu.vector_store %arg2[%c0_3, %c0_4], %5 {strides = array<i32>} : memref<16x128xf32, #tpu.memory_space<vmem>>, vector<16x128xf32>,
    return
  }
  func.func @transform_0(%arg0: i32) -> (i32, i32) {
    %c0_i32 = arith.constant 0 : i32
    %c0_i32_0 = arith.constant 0 : i32
    return %arg0, %c0_i32 : i32, i32
  }
  func.func @transform_1(%arg0: i32) -> (i32, i32) {
    %c0_i32 = arith.constant 0 : i32
    %c0_i32_0 = arith.constant 0 : i32
    return %arg0, %c0_i32 : i32, i32
  }
}

</mosaic_0001>

<llo_original>
// kernel: tpu_custom_call.1
$region0: #{tpu_custom_call.1}
  #allocation0 [shape = 'u32[]', space=smem, size = 0x4, offset = 0x4, fixed_abs, tag = 'smem constant byte address 0x4 - core index']
  #allocation1 [shape = 'u32[72,128]{1,0:T(1,128)}', space=vmem, size = 0x9000, scoped, tag = 'internal scratch']
  %s0 = inlined_call_operand.hbm [shape: f32[16,128], index: 0, kind: input, shape index: {}]
  %s1 = inlined_call_operand.hbm [shape: f32[16,128], index: 1, kind: output, shape index: {}]
  %s2 = sld [smem:[#allocation0]]
  $region18: #{tpu_custom_call.1} parent=0
    _
  %s4 = ssub.s32 1, %s2
  %s5 = scalar_select 0, %s4, %s2
  $region1: #{tpu_custom_call.1} parent=0
    #allocation2 [shape = 'u8[8192]{0}', space=vmem, size = 0x2000, scoped, tag = 'input window, operand 0, single buffered']
    #allocation3 [shape = 's32[1]{0}', space=sflag, size = 0x4, scoped, tag = 'scoped memory for tpu_custom_call.1']
    #allocation4 [shape = 's32[1]{0}', space=sflag, size = 0x4, scoped, tag = 'scoped memory for tpu_custom_call.1']
    #allocation5 [shape = 'u8[8192]{0}', space=vmem, size = 0x2000, scoped, tag = 'output window, operand 0, single buffered']
    %6 = vsyncpa [#allocation3], 0
    %7 = vsyncpa [#allocation4], 0
    // Predicated region
    $region2: #{tpu_custom_call.1} parent=1 // pred_check
      _
    $region3: #{tpu_custom_call.1} parent=1 // pred_check_branch
      %9 = sbr.rel (0) target = $region5
    $region4: #{tpu_custom_call.1} parent=1 // pred_region
      %11 = vsyncadd [#allocation3], 0
      %s12 = sshll.u32 %s0, 4
      %s13 = int_to_ptr.hbm [resolvable:$true] %s12
      %s14 = sshll.u32 [#allocation2], 4
      %s15 = int_to_ptr.vmem [resolvable:$true] %s14
      %20 = dma.hbm_to_vmem [thread:$0]  %s13, 256, %s15, [#allocation3], 128, 128, 8
    $region5: #{tpu_custom_call.1} parent=1 // pred_fallthru
      _
    // Predicated region
    $region6: #{tpu_custom_call.1} parent=1 // pred_check
      _
    $region7: #{tpu_custom_call.1} parent=1 // pred_check_branch
      %22 = sbr.rel (0) target = $region9
    $region8: #{tpu_custom_call.1} parent=1 // pred_region
      %24 = dma.done [#allocation3], 256
    $region9: #{tpu_custom_call.1} parent=1 // pred_fallthru
      _
    %v25 = vld [vmem:[#allocation2] sm:$0xff]
    %v26 = vld [vmem:[#allocation2 + $0x8] sm:$0xff]
    %vm27 = vcmp.gt.f32.partialorder %v25, 0.0
    %vm28 = vcmp.gt.f32.partialorder %v26, 0.0
    %v29 = vsel %vm27, 1.0, 0.0
    %v30 = vsel %vm28, 1.0, 0.0
    %31 = vst [vmem:[#allocation5] sm:$0xff] %v29
    %32 = vst [vmem:[#allocation5 + $0x8] sm:$0xff] %v30
    // Predicated region
    $region10: #{tpu_custom_call.1} parent=1 // pred_check
      _
    $region11: #{tpu_custom_call.1} parent=1 // pred_check_branch
      %34 = sbr.rel (0) target = $region13
    $region12: #{tpu_custom_call.1} parent=1 // pred_region
      %36 = vsyncadd [#allocation4], 0
      %s37 = sshll.u32 [#allocation5], 4
      %s38 = int_to_ptr.vmem [resolvable:$true] %s37
      %s39 = sshll.u32 %s1, 4
      %s40 = int_to_ptr.hbm [resolvable:$true] %s39
      %45 = dma.vmem_to_hbm [thread:$0]  %s38, 256, %s40, [#allocation4], 128, 128, 8
    $region13: #{tpu_custom_call.1} parent=1 // pred_fallthru
      _
    // Predicated region
    $region14: #{tpu_custom_call.1} parent=1 // pred_check
      _
    $region15: #{tpu_custom_call.1} parent=1 // pred_check_branch
      %47 = sbr.rel (0) target = $region17
    $region16: #{tpu_custom_call.1} parent=1 // pred_region
      %49 = dma.done [#allocation4], 256
    $region17: #{tpu_custom_call.1} parent=1 // pred_fallthru
      _
    %50 = vsyncpa [#allocation3], 1
    %51 = vsyncpa [#allocation4], 1

</llo_original>
